<compile_context>
chip_gen: v6e
topology: v6e:2x2x1
jax: 0.10.0
libtpu: 0.0.40
codegen_flags: <defaults>
</compile_context>

<pallas_src>
import functools

import numpy as np
import jax
import jax.numpy as jnp
from jax.experimental import pallas as pl
from jax.experimental.pallas import tpu as pltpu


def _basket_kernel(fd_ref, q_ref, e_ref, eo_ref, out_ref):
    # (tile_rows, G*K) @ (G*K, G*D) on the MXU, f32 accumulation, native
    # operand dtype (bf16 operands are fine; sigmoid output makes HIGHEST
    # precision pointless).
    at = jnp.dot(fd_ref[...], e_ref[...], preferred_element_type=jnp.float32)
    q = q_ref[...].astype(jnp.float32)
    out = jax.nn.sigmoid(q * (1.0 + at) + eo_ref[...])
    out_ref[...] = out.astype(out_ref.dtype)


def _vmem_limit_bytes():
    """Per-chip scoped VMEM limit: ~48 MiB on 64 MiB (v7x), ~96 MiB on 128 MiB."""
    cap = 64 * 1024 * 1024
    try:
        cap = int(getattr(pltpu.get_tpu_info(), "vmem_capacity_bytes", cap))
    except Exception:
        pass
    return min(100 * 1024 * 1024, int(cap * 3 // 4))


def _pick_tile_rows(n_rows, gk, gd, in_itemsize, out_itemsize, vmem_limit,
                    target_step_bytes=8 * 1024 * 1024):
    """Row tile sized by bytes streamed per grid step, clamped by VMEM.

    Rounds to the sublane-packing multiple of the narrowest dtype
    (8 for f32, 16 for bf16, 32 for 8-bit).
    """
    mult = max(8, 32 // min(in_itemsize, out_itemsize))
    fixed = gk * gd * in_itemsize + gd * 4            # resident weight + bias
    tile_budget = max(vmem_limit - fixed - (4 << 20), 2 << 20)
    per_row_stream = (gk + gd) * in_itemsize + gd * out_itemsize
    per_row_vmem = 2 * per_row_stream                  # 2x double-buffered tiles
    tile = min(target_step_bytes // per_row_stream, tile_budget // per_row_vmem)
    tile = max(mult, (tile // mult) * mult)
    if tile >= n_rows:
        return int(n_rows)                             # single full-extent block
    return int(tile)


@functools.partial(jax.jit, static_argnames=("tile_rows", "vmem_limit"))
def _forward(f2, q2, E_big, eo_big, *, tile_rows, vmem_limit):
    ng, gk = f2.shape
    _, gd = q2.shape
    out = pl.pallas_call(
        _basket_kernel,
        out_shape=jax.ShapeDtypeStruct((ng, gd), q2.dtype),
        grid_spec=pltpu.PrefetchScalarGridSpec(
            num_scalar_prefetch=0,
            grid=(pl.cdiv(ng, tile_rows),),            # ragged last block OK
            in_specs=[
                pl.BlockSpec((tile_rows, gk), lambda i: (i, 0)),
                pl.BlockSpec((tile_rows, gd), lambda i: (i, 0)),
                pl.BlockSpec((gk, gd), lambda i: (0, 0)),   # weight: VMEM resident
                pl.BlockSpec((1, gd), lambda i: (0, 0)),    # bias:   VMEM resident
            ],
            out_specs=pl.BlockSpec((tile_rows, gd), lambda i: (i, 0)),
        ),
        compiler_params=pltpu.CompilerParams(
            dimension_semantics=("parallel",),          # megacore shards the rows
            vmem_limit_bytes=vmem_limit,
        ),
    )(f2, q2, E_big, eo_big)
    return out


def basket_gru_mis_forward(q, f, discount_mask, E, e_o):
    """Forward pass of basket_GRU_MIS (MI_dropout=False).

    q: (B, T, D), f: (B, T, 2, F), discount_mask: (F,) concrete bool,
    E: (Dd, D) with Dd == sum(discount_mask), e_o: (D,).
    Returns (B, T, D) in q's dtype.
    """
    B, T, D = q.shape
    Fdim = f.shape[-1]
    N = B * T
    K = 2 * Fdim

    # discount_mask is a fixed module attribute -> static numpy (also avoids
    # NonConcreteBooleanIndexError from boolean indexing on a traced mask).
    mask_np = np.asarray(discount_mask, dtype=bool)
    idx = np.nonzero(mask_np)[0]
    assert idx.shape[0] == E.shape[0], "sum(discount_mask) must equal E.shape[0]"

    # Lane-packing group: pack G consecutive rows so the kernel's last dim is
    # a multiple of 128 lanes (dense, unmasked stores).
    if D < 128 and 128 % D == 0:
        G = 128 // D
    else:
        G = 1                      # TODO(synk): no lane packing when D !| 128
    while N % G != 0:              # G is a power of two; avoid padding copies
        G //= 2
    GK, GD = G * K, G * D
    NG = N // G

    # Fold mask + channel-1 selection into the weight, then block-diagonalize
    # for the lane-packed layout: f2 @ E_big == concat_g(f_row_g[:,mask_ch1] @ E).
    E_full = jnp.zeros((K, D), jnp.float32).at[Fdim + idx].set(E.astype(jnp.float32))
    E_big = jnp.kron(jnp.eye(G, dtype=jnp.float32), E_full) if G > 1 else E_full
    E_big = E_big.astype(f.dtype)                       # native-dtype MXU operands
    eo_big = jnp.tile(e_o.astype(jnp.float32), G).reshape(1, GD)

    # Contiguous reshapes only (views inside jit) -- no casts, no pads.
    f2 = f.reshape(NG, GK)
    q2 = q.reshape(NG, GD)

    vmem_limit = _vmem_limit_bytes()
    tile_rows = _pick_tile_rows(
        NG, GK, GD,
        in_itemsize=max(f.dtype.itemsize, q.dtype.itemsize),
        out_itemsize=q.dtype.itemsize,
        vmem_limit=vmem_limit,
    )

    out = _forward(f2, q2, E_big, eo_big, tile_rows=tile_rows, vmem_limit=vmem_limit)
    return out.reshape(B, T, D)


if __name__ == "__main__":
    key = jax.random.PRNGKey(0)

    # Small shapes consistent with the module's forward.
    B, T, D, F = 2, 8, 32, 16                  # input_dim = D, f feature dim = F
    mask = np.array([i % 2 == 0 for i in range(F)], dtype=bool)   # static mask
    Dd = int(mask.sum())

    k_q, k_f, k_E = jax.random.split(key, 3)
    q = jax.random.uniform(k_q, (B, T, D), dtype=jnp.float32)
    f = jax.random.uniform(k_f, (B, T, 2, F), dtype=jnp.float32)

    # Parameters as in __init__: e_o = zeros(D); E ~ xavier_uniform(Dd, D).
    e_o = jnp.zeros((D,), dtype=jnp.float32)
    limit = (6.0 / (Dd + D)) ** 0.5
    E = jax.random.uniform(k_E, (Dd, D), minval=-limit, maxval=limit,
                           dtype=jnp.float32)

    out = basket_gru_mis_forward(q, f, mask, E, e_o)
    out = jax.block_until_ready(out)

    # Sanity check vs. pure-JAX reference.  Kernel uses default MXU precision
    # (bf16 operands, f32 accumulation), so compare with a loose tolerance.
    dt_ref = f[:, :, 1, :][..., mask]
    at_ref = jnp.einsum("btk,kd->btd", dt_ref, E,
                        precision=jax.lax.Precision.HIGHEST)
    ref = jax.nn.sigmoid(q * (1.0 + at_ref) + e_o[None, None, :])
    assert out.shape == (B, T, D)
    assert out.dtype == q.dtype
    assert float(jnp.max(jnp.abs(out.astype(jnp.float32) - ref))) < 1e-2

    print("KERNEL_OK")
</pallas_src>

<mosaic_0001>
module attributes {stable_mosaic.version = 11 : i64} {
  func.func @_basket_kernel(%arg0: i32, %arg1: memref<4x128xf32, #tpu.memory_space<vmem>>, %arg2: memref<4x128xf32, #tpu.memory_space<vmem>>, %arg3: memref<128x128xf32, #tpu.memory_space<vmem>>, %arg4: memref<1x128xf32, #tpu.memory_space<vmem>>, %arg5: memref<4x128xf32, #tpu.memory_space<vmem>>) attributes {dimension_semantics = [#tpu.dimension_semantics<parallel>], iteration_bounds = array<i64: 1>, scalar_prefetch = 0 : i64, scratch_operands = 0 : i64, tpu.core_type = #tpu.core_type<tc>, window_params = [{transform_indices = @transform_0, window_bounds = array<i64: 4, 128>}, {transform_indices = @transform_1, window_bounds = array<i64: 4, 128>}, {pipeline_mode = #tpu.pipeline_mode<synchronous>, transform_indices = @transform_2, window_bounds = array<i64: 128, 128>}, {pipeline_mode = #tpu.pipeline_mode<synchronous>, transform_indices = @transform_3, window_bounds = array<i64: 1, 128>}, {transform_indices = @transform_4, window_bounds = array<i64: 4, 128>}]} {
    %c0 = arith.constant 0 : index
    %c0_0 = arith.constant 0 : index
    %0 = vector.load %arg1[%c0, %c0_0] : memref<4x128xf32, #tpu.memory_space<vmem>>, vector<4x128xf32>
    %c0_1 = arith.constant 0 : index
    %c0_2 = arith.constant 0 : index
    %1 = vector.load %arg3[%c0_1, %c0_2] : memref<128x128xf32, #tpu.memory_space<vmem>>, vector<128x128xf32>
    %cst = arith.constant dense<0.000000e+00> : vector<4x128xf32>
    %2 = tpu.matmul %0, %1, %cst {dimension_numbers = #tpu.dot_dimension_numbers<[1], [0], [0], [1], [0, 0, 1, 1], [], []>} : vector<4x128xf32>, vector<128x128xf32>, vector<4x128xf32> -> vector<4x128xf32>
    %c0_3 = arith.constant 0 : index
    %c0_4 = arith.constant 0 : index
    %3 = vector.load %arg2[%c0_3, %c0_4] : memref<4x128xf32, #tpu.memory_space<vmem>>, vector<4x128xf32>
    %cst_5 = arith.constant 1.000000e+00 : f32
    %4 = vector.broadcast %cst_5 : f32 to vector<4x128xf32>
    %5 = arith.addf %4, %2 : vector<4x128xf32>
    %6 = arith.mulf %3, %5 : vector<4x128xf32>
    %c0_6 = arith.constant 0 : index
    %c0_7 = arith.constant 0 : index
    %7 = vector.load %arg4[%c0_6, %c0_7] : memref<1x128xf32, #tpu.memory_space<vmem>>, vector<1x128xf32>
    %8 = vector.broadcast %7 : vector<1x128xf32> to vector<4x128xf32>
    %9 = arith.addf %6, %8 : vector<4x128xf32>
    %10 = arith.negf %9 : vector<4x128xf32>
    %11 = math.exp %10 : vector<4x128xf32>
    %cst_8 = arith.constant 1.000000e+00 : f32
    %12 = vector.broadcast %cst_8 : f32 to vector<4x128xf32>
    %13 = arith.addf %12, %11 : vector<4x128xf32>
    %14 = arith.divf %12, %13 : vector<4x128xf32>
    %c0_9 = arith.constant 0 : index
    %c0_10 = arith.constant 0 : index
    %15 = vector.load %arg5[%c0_9, %c0_10] : memref<4x128xf32, #tpu.memory_space<vmem>>, vector<4x128xf32>
    tpu.vector_store %arg5[%c0_9, %c0_10], %14 {strides = array<i32>} : memref<4x128xf32, #tpu.memory_space<vmem>>, vector<4x128xf32>,
    return
  }
  func.func @transform_0(%arg0: i32) -> (i32, i32) {
    %c0_i32 = arith.constant 0 : i32
    %c0_i32_0 = arith.constant 0 : i32
    return %arg0, %c0_i32 : i32, i32
  }
  func.func @transform_1(%arg0: i32) -> (i32, i32) {
    %c0_i32 = arith.constant 0 : i32
    %c0_i32_0 = arith.constant 0 : i32
    return %arg0, %c0_i32 : i32, i32
  }
  func.func @transform_2(%arg0: i32) -> (i32, i32) {
    %c0_i32 = arith.constant 0 : i32
    %c0_i32_0 = arith.constant 0 : i32
    %c0_i32_1 = arith.constant 0 : i32
    return %c0_i32, %c0_i32_0 : i32, i32
  }
  func.func @transform_3(%arg0: i32) -> (i32, i32) {
    %c0_i32 = arith.constant 0 : i32
    %c0_i32_0 = arith.constant 0 : i32
    %c0_i32_1 = arith.constant 0 : i32
    return %c0_i32, %c0_i32_0 : i32, i32
  }
  func.func @transform_4(%arg0: i32) -> (i32, i32) {
    %c0_i32 = arith.constant 0 : i32
    %c0_i32_0 = arith.constant 0 : i32
    return %arg0, %c0_i32 : i32, i32
  }
}

</mosaic_0001>

<llo_original>
// kernel: _forward.1
$region0: #{_forward.1}
  #allocation0 [shape = 'u32[]', space=smem, size = 0x4, offset = 0x4, fixed_abs, tag = 'smem constant byte address 0x4 - core index']
  #allocation1 [shape = 'u32[144,128]{1,0:T(1,128)}', space=vmem, size = 0x12000, scoped, tag = 'internal scratch']
  %s0 = inlined_call_operand.hbm [shape: f32[4,128], index: 0, kind: input, shape index: {}]
  %s1 = inlined_call_operand.hbm [shape: f32[4,128], index: 1, kind: input, shape index: {}]
  %s2 = inlined_call_operand.hbm [shape: f32[128,128], index: 2, kind: input, shape index: {}]
  %s3 = inlined_call_operand.vmem [shape: f32[1,128], index: 3, kind: input, shape index: {}]
  %s4 = inlined_call_operand.hbm [shape: f32[4,128], index: 4, kind: output, shape index: {}]
  %s5 = sld [smem:[#allocation0]]
  $region38: #{_forward.1} parent=0
    _
  %s7 = ssub.s32 1, %s5
  %s8 = scalar_select 0, %s7, %s5
  $region1: #{_forward.1} parent=0
    #allocation2 [shape = 'u8[2048]{0}', space=vmem, size = 0x800, scoped, tag = 'input window, operand 0, single buffered']
    #allocation3 [shape = 's32[1]{0}', space=sflag, size = 0x4, scoped, tag = 'scoped memory for _forward.1']
    #allocation4 [shape = 's32[1]{0}', space=sflag, size = 0x4, scoped, tag = 'scoped memory for _forward.1']
    #allocation5 [shape = 'u8[2048]{0}', space=vmem, size = 0x800, scoped, tag = 'input window, operand 1, single buffered']
    #allocation6 [shape = 's32[1]{0}', space=sflag, size = 0x4, scoped, tag = 'scoped memory for _forward.1']
    #allocation7 [shape = 'u8[65536]{0}', space=vmem, size = 0x10000, scoped, tag = 'input window, operand 2, single buffered']
    #allocation8 [shape = 'u8[2048]{0}', space=vmem, size = 0x800, scoped, tag = 'output window, operand 0, single buffered']
    %9 = vsyncpa [#allocation3], 0
    %10 = vsyncpa [#allocation6], 0
    %11 = vsyncpa [#allocation4], 0
    // Predicated region
    $region2: #{_forward.1} parent=1 // pred_check
      _
    $region3: #{_forward.1} parent=1 // pred_check_branch
      %13 = sbr.rel (0) target = $region5
    $region4: #{_forward.1} parent=1 // pred_region
      %s15 = ssub.s32 64, 64
      %16 = vsyncadd [#allocation3], %s15
      %s18 = sshll.u32 [#allocation2], 4
      %s19 = int_to_ptr.vmem [resolvable:$true] %s18
      %21 = dma.hbm_to_vmem [thread:$0]  %s0, 64, %s19, [#allocation3]
    $region5: #{_forward.1} parent=1 // pred_fallthru
      _
    // Predicated region
    $region6: #{_forward.1} parent=1 // pred_check
      _
    $region7: #{_forward.1} parent=1 // pred_check_branch
      %23 = sbr.rel (0) target = $region9
    $region8: #{_forward.1} parent=1 // pred_region
      %s25 = ssub.s32 64, 64
      %26 = vsyncadd [#allocation6], %s25
      %s28 = sshll.u32 [#allocation5], 4
      %s29 = int_to_ptr.vmem [resolvable:$true] %s28
      %31 = dma.hbm_to_vmem [thread:$0]  %s1, 64, %s29, [#allocation6]
    $region9: #{_forward.1} parent=1 // pred_fallthru
      _
    // Predicated region
    $region10: #{_forward.1} parent=1 // pred_check
      _
    $region11: #{_forward.1} parent=1 // pred_check_branch
      %33 = sbr.rel (0) target = $region13
    $region12: #{_forward.1} parent=1 // pred_region
      %s35 = ssub.s32 2048, 2048
      %36 = vsyncadd [#allocation6], %s35
      %s37 = sshll.u32 [#allocation7], 4
      %s38 = int_to_ptr.vmem [resolvable:$true] %s37
      %43 = dma.hbm_to_vmem [thread:$0]  %s2, 2048, %s38, [#allocation6], 128, 128, 8
    $region13: #{_forward.1} parent=1 // pred_fallthru
      _
    // Predicated region
    $region14: #{_forward.1} parent=1 // pred_check
      _
    $region15: #{_forward.1} parent=1 // pred_check_branch
      %45 = sbr.rel (0) target = $region17
    $region16: #{_forward.1} parent=1 // pred_region
      _
    $region17: #{_forward.1} parent=1 // pred_fallthru
      _
    // Predicated region
    $region18: #{_forward.1} parent=1 // pred_check
      _
    $region19: #{_forward.1} parent=1 // pred_check_branch
      %47 = sbr.rel (0) target = $region21
    $region20: #{_forward.1} parent=1 // pred_region
      %48 = dma.done [#allocation3], 64
    $region21: #{_forward.1} parent=1 // pred_fallthru
      _
    // Predicated region
    $region22: #{_forward.1} parent=1 // pred_check
      _
    $region23: #{_forward.1} parent=1 // pred_check_branch
      %50 = sbr.rel (0) target = $region25
    $region24: #{_forward.1} parent=1 // pred_region
      %51 = dma.done [#allocation6], 64
    $region25: #{_forward.1} parent=1 // pred_fallthru
      _
    // Predicated region
    $region26: #{_forward.1} parent=1 // pred_check
      _
    $region27: #{_forward.1} parent=1 // pred_check_branch
      %53 = sbr.rel (0) target = $region29
    $region28: #{_forward.1} parent=1 // pred_region
      %54 = dma.done [#allocation6], 2048
    $region29: #{_forward.1} parent=1 // pred_fallthru
      _
    %v55 = vld [vmem:[#allocation2] sm:$0xf]
    %v56 = vld [vmem:[#allocation7] sm:$0xff]
    %v57 = vld [vmem:[#allocation7 + $0x8] sm:$0xff]
    %v58 = vld [vmem:[#allocation7 + $0x10] sm:$0xff]
    %v59 = vld [vmem:[#allocation7 + $0x18] sm:$0xff]
    %v60 = vld [vmem:[#allocation7 + $0x20] sm:$0xff]
    %v61 = vld [vmem:[#allocation7 + $0x28] sm:$0xff]
    %v62 = vld [vmem:[#allocation7 + $0x30] sm:$0xff]
    %v63 = vld [vmem:[#allocation7 + $0x38] sm:$0xff]
    %v64 = vld [vmem:[#allocation7 + $0x40] sm:$0xff]
    %v65 = vld [vmem:[#allocation7 + $0x48] sm:$0xff]
    %v66 = vld [vmem:[#allocation7 + $0x50] sm:$0xff]
    %v67 = vld [vmem:[#allocation7 + $0x58] sm:$0xff]
    %v68 = vld [vmem:[#allocation7 + $0x60] sm:$0xff]
    %v69 = vld [vmem:[#allocation7 + $0x68] sm:$0xff]
    %v70 = vld [vmem:[#allocation7 + $0x70] sm:$0xff]
    %v71 = vld [vmem:[#allocation7 + $0x78] sm:$0xff]
    %v72 = vld [vmem:[#allocation5] sm:$0xf]
    %73 = vmatprep.subr.mxu0 0.0
    %74 = vmatpush1.msra.mxu0 %v71
    %75 = vmatprep.subr.mxu0 0.0
    %76 = vmatpush1.msra.mxu0 %v70
    %77 = vmatprep.subr.mxu0 0.0
    %78 = vmatpush1.msra.mxu0 %v69
    %79 = vmatprep.subr.mxu0 0.0
    %80 = vmatpush1.msra.mxu0 %v68
    %81 = vmatprep.subr.mxu0 0.0
    %82 = vmatpush1.msra.mxu0 %v67
    %83 = vmatprep.subr.mxu0 0.0
    %84 = vmatpush1.msra.mxu0 %v66
    %85 = vmatprep.subr.mxu0 0.0
    %86 = vmatpush1.msra.mxu0 %v65
    %87 = vmatprep.subr.mxu0 0.0
    %88 = vmatpush1.msra.mxu0 %v64
    %89 = vmatprep.subr.mxu0 0.0
    %90 = vmatpush1.msra.mxu0 %v63
    %91 = vmatprep.subr.mxu0 0.0
    %92 = vmatpush1.msra.mxu0 %v62
    %93 = vmatprep.subr.mxu0 0.0
    %94 = vmatpush1.msra.mxu0 %v61
    %95 = vmatprep.subr.mxu0 0.0
    %96 = vmatpush1.msra.mxu0 %v60
    %97 = vmatprep.subr.mxu0 0.0
    %98 = vmatpush1.msra.mxu0 %v59
    %99 = vmatprep.subr.mxu0 0.0
    %100 = vmatpush1.msra.mxu0 %v58
    %101 = vmatprep.subr.mxu0 0.0
    %102 = vmatpush1.msra.mxu0 %v57
    %103 = vmatprep.subr.mxu0 0.0
    %104 = vmatpush1.msra.mxu0 %v56
    %105 = vmatprep.subr.mxu0 0.0
    %106 = vmatpush2.msra.mxu0 0.0
    %107 = vmatprep.subr.mxu0 0.0
    %108 = vmatpush2.msra.mxu0 0.0
    %109 = vmatprep.subr.mxu0 0.0
    %110 = vmatpush2.msra.mxu0 0.0
    %111 = vmatprep.subr.mxu0 0.0
    %112 = vmatpush2.msra.mxu0 0.0
    %113 = vmatprep.subr.mxu0 0.0
    %114 = vmatpush2.msra.mxu0 0.0
    %115 = vmatprep.subr.mxu0 0.0
    %116 = vmatpush2.msra.mxu0 0.0
    %117 = vmatprep.subr.mxu0 0.0
    %118 = vmatpush2.msra.mxu0 0.0
    %119 = vmatprep.subr.mxu0 0.0
    %120 = vmatpush2.msra.mxu0 0.0
    %121 = vmatprep.subr.mxu0 0.0
    %122 = vmatpush2.msra.mxu0 0.0
    %123 = vmatprep.subr.mxu0 0.0
    %124 = vmatpush2.msra.mxu0 0.0
    %125 = vmatprep.subr.mxu0 0.0
    %126 = vmatpush2.msra.mxu0 0.0
    %127 = vmatprep.subr.mxu0 0.0
    %128 = vmatpush2.msra.mxu0 0.0
    %129 = vmatprep.subr.mxu0 0.0
    %130 = vmatpush2.msra.mxu0 0.0
    %131 = vmatprep.subr.mxu0 0.0
    %132 = vmatpush2.msra.mxu0 0.0
    %133 = vmatprep.subr.mxu0 0.0
    %134 = vmatpush2.msra.mxu0 0.0
    %135 = vmatprep.subr.mxu0 0.0
    %136 = vmatpush2.msra.mxu0 0.0
    %137 = vmatprep.mubr.f32.mxu0 0.0
    %138 = vmatmul.mubr.f32.gmra.mxu0 %v55
    %v139 = vpop.f32.mrf.mxu0
    %v140 = vadd.f32 1.0, %v139
    %v141 = vpop.f32.mrf.mxu0
    %142 = vdwg.mxu0
    %v143 = vmul.f32 %v72, %v140
    %v144 = vld [vmem:[%s3] sm:$0x1]
    %v146 = vlaneseq
    %v147 = vshrl.u32 %v146, 7
    %v148 = vsub.s32 0, %v147
    %v149 = vrot.slane %v144, %v148
    %v151 = vadd.f32 %v143, %v149
    %v152 = vxor.u32 %v151, 2147483648
    %v153 = vmul.f32 %v152, 1.442695
    %v154 = vpow.pop %v153
    %v155 = vadd.f32 %v154, 1.0
    %v156 = vrcp.pop %v155
    %v157 = vmul.f32 1.0, %v156
    %158 = vst [vmem:[#allocation8] sm:$0xf] %v157
    // Predicated region
    $region30: #{_forward.1} parent=1 // pred_check
      _
    $region31: #{_forward.1} parent=1 // pred_check_branch
      %160 = sbr.rel (0) target = $region33
    $region32: #{_forward.1} parent=1 // pred_region
      %s162 = ssub.s32 64, 64
      %163 = vsyncadd [#allocation4], %s162
      %s165 = sshll.u32 [#allocation8], 4
      %s166 = int_to_ptr.vmem [resolvable:$true] %s165
      %168 = dma.vmem_to_hbm [thread:$0]  %s166, 64, %s4, [#allocation4]
    $region33: #{_forward.1} parent=1 // pred_fallthru
      _
    // Predicated region
    $region34: #{_forward.1} parent=1 // pred_check
      _
    $region35: #{_forward.1} parent=1 // pred_check_branch
      %170 = sbr.rel (0) target = $region37
    $region36: #{_forward.1} parent=1 // pred_region
      %171 = dma.done [#allocation4], 64
    $region37: #{_forward.1} parent=1 // pred_fallthru
      _
    %172 = vsyncpa [#allocation3], 1
    %173 = vsyncpa [#allocation6], 1
    %174 = vsyncpa [#allocation4], 1

</llo_original>
